<compile_context>
chip_gen: v5e
topology: v5e:2x2
jax: 0.10.0
libtpu: 0.0.40
codegen_flags: <defaults>
</compile_context>

<pallas_src>
import math
import jax
import jax.numpy as jnp
from jax.experimental import pallas as pl
from jax.experimental.pallas import tpu as pltpu

PROJECTION_DIM = 128        # projection_dim == clip embed_dim (projections are Identity)
BATCH = 2
NODES_PER_GRAPH = 8         # padded node slots per retrieved subgraph
TOTAL_NODES = BATCH * NODES_PER_GRAPH   # 16

# Activation-slab row layout (8-sublane aligned sections).
Q_ROW = TOTAL_NODES                     # 16: question features   [B, d]
ANS_ROW = 24                            # 24: answers (lane-broadcast) [B, d]
BIAS_ROW = 32                           # 32: gcn_b | folded cls-1 bias | cls_w2 | cls_b2
FEAT_ROWS = 40
OUT_ROWS = 8                            # single lane-dense (8, 128) output slab


def mkbn_kernel(feat_ref, graph_ref, w_ref, out_ref):
    """Fused GCN + folded seq-len-1 attentions + classifier + BCE-with-logits.

    feat_ref : [FEAT_ROWS, d] f32  rows 0:16 node feats, 16:18 question feats,
                                   24:26 answers (lane-broadcast), 32:36 bias rows
    graph_ref: [M+B, M]       f32  rows 0:M  GCN-normalized block-diag adjacency,
                                   rows M:M+B global_mean_pool matrix
    w_ref    : [3d, d]        bf16 rows 0:d   gcn_w.T
                                   rows d:2d  M1T  (question -> classifier-h1 fold)
                                   rows 2d:3d M23T (graph    -> classifier-h1 fold)
    out_ref  : [8, d]         f32  rows 0:B logits (lane-broadcast), row B loss
    """
    d = w_ref.shape[1]
    M = TOTAL_NODES
    B = BATCH
    f32 = jnp.float32
    bf16 = jnp.bfloat16

    adj = graph_ref[0:M, :]                       # D^-1/2 (A + I) D^-1/2, block-diag
    pool = graph_ref[M:M + B, :]                  # global_mean_pool matrix [B, M]
    nodes = feat_ref[0:M, :]                      # [M, d]

    gcn_b = feat_ref[BIAS_ROW:BIAS_ROW + 1, :]
    cls_b1 = feat_ref[BIAS_ROW + 1:BIAS_ROW + 2, :]   # folded classifier-1 bias
    cls_w2 = feat_ref[BIAS_ROW + 2:BIAS_ROW + 3, :]
    cls_b2 = feat_ref[BIAS_ROW + 3:BIAS_ROW + 4, :]

    # ---- GCNConv + ReLU (dropout p=0.8 identity in eval mode) ----
    # adj@nodes and pool@h stay f32: extra MXU passes are free at this size and
    # the normalization / mean-pool coefficients keep full precision.
    ax = jnp.dot(adj, nodes, preferred_element_type=f32)                       # [M, d]
    h = jnp.dot(ax.astype(bf16), w_ref[0:d, :],
                preferred_element_type=f32) + gcn_b                            # [M, d]
    h = jnp.maximum(h, 0.0)
    graph_feat = jnp.dot(pool, h, preferred_element_type=f32)                  # [B, d]

    # ---- folded seq-len-1 attentions + classifier Linear(3d, d) + ReLU ----
    # Softmax over a length-1 key axis == 1, so each attention output depends
    # only on its *value* input; value-proj, out-proj, concat and classifier
    # layer 1 were pre-folded host-side into the two [d, d] matmuls below.
    ques = feat_ref[Q_ROW:Q_ROW + B, :]                                        # [B, d]
    h1 = (jnp.dot(ques.astype(bf16), w_ref[d:2 * d, :], preferred_element_type=f32)
          + jnp.dot(graph_feat.astype(bf16), w_ref[2 * d:3 * d, :],
                    preferred_element_type=f32)
          + cls_b1)
    h1 = jnp.maximum(h1, 0.0)                     # ReLU; Dropout(0.8) identity in eval

    # ---- classifier Linear(d, 1) ----
    logits = jnp.sum(h1 * cls_w2, axis=-1, keepdims=True) + cls_b2[:, 0:1]     # [B, 1]

    # ---- binary_cross_entropy_with_logits, mean reduction ----
    y = feat_ref[ANS_ROW:ANS_ROW + B, 0:1]                                     # [B, 1]
    per = (jnp.maximum(logits, 0.0) - logits * y
           + jnp.log(1.0 + jnp.exp(-jnp.abs(logits))))
    loss = jnp.mean(per).reshape(1, 1)

    # ---- single lane-dense (8, 128) output: one unmasked store, one DMA ----
    out_ref[...] = jnp.concatenate(
        [jnp.broadcast_to(logits, (B, d)),
         jnp.broadcast_to(loss, (1, d)),
         jnp.zeros((OUT_ROWS - B - 1, d), f32)], axis=0)


def fold_params(params, d=PROJECTION_DIM):
    """Host-side algebraic folding + packing. Input-independent: call ONCE."""
    (gcn_w, gcn_b,
     iq_in_w, iq_in_b, iq_out_w, iq_out_b,
     qg_in_w, qg_in_b, qg_out_w, qg_out_b,
     ig_in_w, ig_in_b, ig_out_w, ig_out_b,
     cls_w1, cls_b1, cls_w2, cls_b2) = params

    def fold(in_w, in_b, out_w, out_b, a_blk):
        # seq-len-1 attention: out = (x @ wv.T + bv) @ out_w.T + out_b  (q/k dead)
        wv = in_w[2 * d:3 * d, :]                 # [d, d] value projection
        bv = in_b[:, 2 * d:3 * d]                 # [1, d]
        mt = wv.T @ out_w.T @ a_blk.T             # [d, d]; kernel computes x @ mt
        c = (bv @ out_w.T + out_b) @ a_blk.T      # [1, d]
        return mt, c

    a1, a2, a3 = cls_w1[:, 0:d], cls_w1[:, d:2 * d], cls_w1[:, 2 * d:3 * d]
    m1t, c1 = fold(iq_in_w, iq_in_b, iq_out_w, iq_out_b, a1)
    m2t, c2 = fold(qg_in_w, qg_in_b, qg_out_w, qg_out_b, a2)
    m3t, c3 = fold(ig_in_w, ig_in_b, ig_out_w, ig_out_b, a3)

    w_slab = jnp.concatenate([gcn_w.T, m1t, m2t + m3t],
                             axis=0).astype(jnp.bfloat16)                 # [3d, d] bf16
    b_rows = jnp.concatenate([gcn_b, cls_b1 + c1 + c2 + c3, cls_w2,
                              jnp.broadcast_to(cls_b2, (1, d))],
                             axis=0).astype(jnp.float32)                  # [4, d] f32
    return w_slab, b_rows


@jax.jit
def mkbn_forward(image_features, question_features, adj_norm, node_feat,
                 pool_mat, answers, w_slab, b_rows):
    # image_features only enter the module as attention *queries*; with seq-len-1
    # single-head attention the softmax is identically 1, so the output is provably
    # independent of them -- no need to DMA them into the kernel.
    del image_features
    d = PROJECTION_DIM

    # Slab assembly fuses into this jitted program (no per-op dispatches).
    feats = jnp.zeros((FEAT_ROWS, d), jnp.float32)
    feats = feats.at[0:TOTAL_NODES, :].set(node_feat)
    feats = feats.at[Q_ROW:Q_ROW + BATCH, :].set(question_features)
    feats = feats.at[ANS_ROW:ANS_ROW + BATCH, :].set(
        jnp.broadcast_to(answers, (BATCH, d)))
    feats = feats.at[BIAS_ROW:BIAS_ROW + 4, :].set(b_rows)
    graph_slab = jnp.concatenate([adj_norm, pool_mat], axis=0)            # [M+B, M]

    vmem = lambda: pl.BlockSpec(memory_space=pltpu.MemorySpace.VMEM)
    out = pl.pallas_call(
        mkbn_kernel,
        out_shape=jax.ShapeDtypeStruct((OUT_ROWS, d), jnp.float32),
        in_specs=[vmem(), vmem(), vmem()],
        out_specs=vmem(),
        cost_estimate=pl.CostEstimate(
            flops=1_500_000, transcendentals=8, bytes_accessed=125_000),
    )(feats, graph_slab, w_slab)
    return out[0:BATCH, 0], out[BATCH, 0]        # logits: [B], loss: scalar


def init_params(key, d=PROJECTION_DIM):
    """Parameters in the original PyTorch layout (folding happens in fold_params)."""
    keys = list(jax.random.split(key, 18))
    ki = iter(keys)

    def lin(shape, scale):
        return jax.random.normal(next(ki), shape, jnp.float32) * scale

    params = []
    # GCNConv(projection_dim, projection_dim): weight [out, in], bias
    params += [lin((d, d), 1.0 / math.sqrt(d)), lin((1, d), 0.01)]
    # 3 x MultiheadAttention(d, 1): in_proj_weight [3d, d], in_proj_bias [1, 3d],
    #                               out_proj.weight [d, d], out_proj.bias [1, d]
    for _ in range(3):
        params += [lin((3 * d, d), 1.0 / math.sqrt(d)),
                   lin((1, 3 * d), 0.01),
                   lin((d, d), 1.0 / math.sqrt(d)),
                   lin((1, d), 0.01)]
    # classifier: Linear(3d, d), Linear(d, 1)
    params += [lin((d, 3 * d), 1.0 / math.sqrt(3 * d)), lin((1, d), 0.01),
               lin((1, d), 1.0 / math.sqrt(d)), lin((1, 1), 0.01)]
    return params


def build_graph_inputs(key):
    """Dense equivalent of extract_subgraph_batch + Batch.from_data_list.

    TODO(synk): the KG subgraph retrieval itself (kg_retriever / CLIP concept
    embeddings) is external; this builds the dense adjacency / pooling inputs
    the kernel consumes.
    """
    k_feat, k_edge = jax.random.split(key)
    counts = (NODES_PER_GRAPH, NODES_PER_GRAPH - 3)   # actual subgraph sizes

    valid = jnp.zeros((TOTAL_NODES,), jnp.float32)
    a = jnp.zeros((TOTAL_NODES, TOTAL_NODES), jnp.float32)
    edge_probs = jax.random.uniform(k_edge, (TOTAL_NODES, TOTAL_NODES))
    for b, c in enumerate(counts):
        s = b * NODES_PER_GRAPH
        block_mask = jnp.zeros((TOTAL_NODES,), jnp.float32).at[s:s + c].set(1.0)
        valid = valid + block_mask
        blk = (edge_probs > 0.5).astype(jnp.float32)
        blk = blk * block_mask[:, None] * block_mask[None, :]
        a = a + blk
    a = jnp.maximum(a, a.T)                      # undirected: edges added both ways
    a = a * (1.0 - jnp.eye(TOTAL_NODES))         # drop raw diagonal
    a_hat = a + jnp.diag(valid)                  # GCN self-loops for valid nodes
    deg = jnp.sum(a_hat, axis=-1)
    dinv = jnp.where(deg > 0, 1.0 / jnp.sqrt(jnp.maximum(deg, 1e-12)), 0.0)
    adj_norm = a_hat * dinv[:, None] * dinv[None, :]

    # synthetic X_fixed: L2-normalized concept embeddings (as in the module)
    raw = jax.random.normal(k_feat, (TOTAL_NODES, PROJECTION_DIM), jnp.float32)
    raw = raw / jnp.linalg.norm(raw, axis=-1, keepdims=True)
    node_feat = raw * valid[:, None]

    pool = jnp.zeros((BATCH, TOTAL_NODES), jnp.float32)
    for b, c in enumerate(counts):
        s = b * NODES_PER_GRAPH
        pool = pool.at[b, s:s + c].set(1.0 / c)
    return adj_norm, node_feat, pool


if __name__ == "__main__":
    key = jax.random.PRNGKey(0)
    k_img, k_q, k_g, k_p, k_a = jax.random.split(key, 5)

    # Outputs of the external CLIP encoders (projection_dim features).
    # TODO(synk): CLIP image/text encoders are external pretrained nets; their
    # feature outputs are the kernel inputs here.
    image_features = jax.random.normal(k_img, (BATCH, PROJECTION_DIM), jnp.float32)
    question_features = jax.random.normal(k_q, (BATCH, PROJECTION_DIM), jnp.float32)
    adj_norm, node_feat, pool_mat = build_graph_inputs(k_g)
    answers = jax.random.bernoulli(k_a, 0.5, (BATCH, 1)).astype(jnp.float32)
    params = init_params(k_p)

    # Parameter fold is input-independent: computed ONCE and reused every call.
    w_slab, b_rows = fold_params(params)
    w_slab = jax.device_put(w_slab)
    b_rows = jax.device_put(b_rows)

    logits, loss = mkbn_forward(image_features, question_features,
                                adj_norm, node_feat, pool_mat, answers,
                                w_slab, b_rows)
    jax.block_until_ready((logits, loss))
    assert logits.shape == (BATCH,)
    assert bool(jnp.all(jnp.isfinite(logits))) and bool(jnp.isfinite(loss))
    print("KERNEL_OK")
</pallas_src>

<mosaic_0001>
module attributes {stable_mosaic.version = 11 : i64} {
  func.func @mkbn_kernel(%arg0: memref<40x128xf32, #tpu.memory_space<vmem>>, %arg1: memref<18x16xf32, #tpu.memory_space<vmem>>, %arg2: memref<384x128xbf16, #tpu.memory_space<vmem>>, %arg3: memref<8x128xf32, #tpu.memory_space<vmem>>) attributes {dimension_semantics = [], scalar_prefetch = 0 : i64, scratch_operands = 0 : i64, tpu.core_type = #tpu.core_type<tc>} {
    %c0 = arith.constant 0 : index
    %c0_0 = arith.constant 0 : index
    %0 = vector.load %arg1[%c0, %c0_0] : memref<18x16xf32, #tpu.memory_space<vmem>>, vector<16x16xf32>
    %c16 = arith.constant 16 : index
    %c0_1 = arith.constant 0 : index
    %1 = vector.load %arg1[%c16, %c0_1] : memref<18x16xf32, #tpu.memory_space<vmem>>, vector<2x16xf32>
    %c0_2 = arith.constant 0 : index
    %c0_3 = arith.constant 0 : index
    %2 = vector.load %arg0[%c0_2, %c0_3] : memref<40x128xf32, #tpu.memory_space<vmem>>, vector<16x128xf32>
    %c32 = arith.constant 32 : index
    %c0_4 = arith.constant 0 : index
    %3 = vector.load %arg0[%c32, %c0_4] : memref<40x128xf32, #tpu.memory_space<vmem>>, vector<1x128xf32>
    %c33 = arith.constant 33 : index
    %c0_5 = arith.constant 0 : index
    %4 = vector.load %arg0[%c33, %c0_5] : memref<40x128xf32, #tpu.memory_space<vmem>>, vector<1x128xf32>
    %c34 = arith.constant 34 : index
    %c0_6 = arith.constant 0 : index
    %5 = vector.load %arg0[%c34, %c0_6] : memref<40x128xf32, #tpu.memory_space<vmem>>, vector<1x128xf32>
    %c35 = arith.constant 35 : index
    %c0_7 = arith.constant 0 : index
    %6 = vector.load %arg0[%c35, %c0_7] : memref<40x128xf32, #tpu.memory_space<vmem>>, vector<1x128xf32>
    %cst = arith.constant dense<0.000000e+00> : vector<16x128xf32>
    %7 = tpu.matmul %0, %2, %cst {dimension_numbers = #tpu.dot_dimension_numbers<[1], [0], [0], [1], [0, 0, 1, 1], [], []>} : vector<16x16xf32>, vector<16x128xf32>, vector<16x128xf32> -> vector<16x128xf32>
    %8 = arith.truncf %7 : vector<16x128xf32> to vector<16x128xbf16>
    %c0_8 = arith.constant 0 : index
    %c0_9 = arith.constant 0 : index
    %9 = vector.load %arg2[%c0_8, %c0_9] : memref<384x128xbf16, #tpu.memory_space<vmem>>, vector<128x128xbf16>
    %cst_10 = arith.constant dense<0.000000e+00> : vector<16x128xf32>
    %10 = tpu.matmul %8, %9, %cst_10 {dimension_numbers = #tpu.dot_dimension_numbers<[1], [0], [0], [1], [0, 0, 1, 1], [], []>} : vector<16x128xbf16>, vector<128x128xbf16>, vector<16x128xf32> -> vector<16x128xf32>
    %11 = vector.broadcast %3 : vector<1x128xf32> to vector<16x128xf32>
    %12 = arith.addf %10, %11 : vector<16x128xf32>
    %cst_11 = arith.constant 0.000000e+00 : f32
    %13 = vector.broadcast %cst_11 : f32 to vector<16x128xf32>
    %14 = arith.maximumf %12, %13 : vector<16x128xf32>
    %cst_12 = arith.constant dense<0.000000e+00> : vector<2x128xf32>
    %15 = tpu.matmul %1, %14, %cst_12 {dimension_numbers = #tpu.dot_dimension_numbers<[1], [0], [0], [1], [0, 0, 1, 1], [], []>} : vector<2x16xf32>, vector<16x128xf32>, vector<2x128xf32> -> vector<2x128xf32>
    %c16_13 = arith.constant 16 : index
    %c0_14 = arith.constant 0 : index
    %16 = vector.load %arg0[%c16_13, %c0_14] : memref<40x128xf32, #tpu.memory_space<vmem>>, vector<2x128xf32>
    %17 = arith.truncf %16 : vector<2x128xf32> to vector<2x128xbf16>
    %c128 = arith.constant 128 : index
    %c0_15 = arith.constant 0 : index
    %18 = vector.load %arg2[%c128, %c0_15] : memref<384x128xbf16, #tpu.memory_space<vmem>>, vector<128x128xbf16>
    %cst_16 = arith.constant dense<0.000000e+00> : vector<2x128xf32>
    %19 = tpu.matmul %17, %18, %cst_16 {dimension_numbers = #tpu.dot_dimension_numbers<[1], [0], [0], [1], [0, 0, 1, 1], [], []>} : vector<2x128xbf16>, vector<128x128xbf16>, vector<2x128xf32> -> vector<2x128xf32>
    %20 = arith.truncf %15 : vector<2x128xf32> to vector<2x128xbf16>
    %c256 = arith.constant 256 : index
    %c0_17 = arith.constant 0 : index
    %21 = vector.load %arg2[%c256, %c0_17] : memref<384x128xbf16, #tpu.memory_space<vmem>>, vector<128x128xbf16>
    %cst_18 = arith.constant dense<0.000000e+00> : vector<2x128xf32>
    %22 = tpu.matmul %20, %21, %cst_18 {dimension_numbers = #tpu.dot_dimension_numbers<[1], [0], [0], [1], [0, 0, 1, 1], [], []>} : vector<2x128xbf16>, vector<128x128xbf16>, vector<2x128xf32> -> vector<2x128xf32>
    %23 = arith.addf %19, %22 : vector<2x128xf32>
    %24 = vector.broadcast %4 : vector<1x128xf32> to vector<2x128xf32>
    %25 = arith.addf %23, %24 : vector<2x128xf32>
    %cst_19 = arith.constant 0.000000e+00 : f32
    %26 = vector.broadcast %cst_19 : f32 to vector<2x128xf32>
    %27 = arith.maximumf %25, %26 : vector<2x128xf32>
    %28 = vector.broadcast %5 : vector<1x128xf32> to vector<2x128xf32>
    %29 = arith.mulf %27, %28 : vector<2x128xf32>
    %cst_20 = arith.constant dense<0.000000e+00> : vector<2xf32>
    %30 = vector.multi_reduction <add>, %29, %cst_20 [1] : vector<2x128xf32> to vector<2xf32>
    %31 = vector.shape_cast %30 : vector<2xf32> to vector<2x1xf32>
    %32 = vector.extract_strided_slice %6 {offsets = [0, 0], sizes = [1, 1], strides = [1, 1]} : vector<1x128xf32> to vector<1x1xf32>
    %33 = vector.broadcast %32 : vector<1x1xf32> to vector<2x1xf32>
    %34 = arith.addf %31, %33 : vector<2x1xf32>
    %c24 = arith.constant 24 : index
    %c0_21 = arith.constant 0 : index
    %35 = vector.load %arg0[%c24, %c0_21] : memref<40x128xf32, #tpu.memory_space<vmem>>, vector<2x1xf32>
    %cst_22 = arith.constant 0.000000e+00 : f32
    %36 = vector.broadcast %cst_22 : f32 to vector<2x1xf32>
    %37 = arith.maximumf %34, %36 : vector<2x1xf32>
    %38 = arith.mulf %34, %35 : vector<2x1xf32>
    %39 = arith.subf %37, %38 : vector<2x1xf32>
    %40 = math.absf %34 : vector<2x1xf32>
    %cst_23 = arith.constant 0.000000e+00 : f32
    %41 = vector.broadcast %cst_23 : f32 to vector<2x1xf32>
    %42 = arith.subf %41, %40 : vector<2x1xf32>
    %43 = math.exp %42 : vector<2x1xf32>
    %cst_24 = arith.constant 1.000000e+00 : f32
    %44 = vector.broadcast %cst_24 : f32 to vector<2x1xf32>
    %45 = arith.addf %44, %43 : vector<2x1xf32>
    %46 = math.log %45 : vector<2x1xf32>
    %47 = arith.addf %39, %46 : vector<2x1xf32>
    %48 = vector.shape_cast %47 : vector<2x1xf32> to vector<1x2x1xf32>
    %cst_25 = arith.constant dense<0.000000e+00> : vector<1xf32>
    %49 = vector.multi_reduction <add>, %48, %cst_25 [1, 2] : vector<1x2x1xf32> to vector<1xf32>
    %50 = vector.shape_cast %49 : vector<1xf32> to vector<1x1x1xf32>
    %51 = vector.extract %50[0, 0, 0] : f32 from vector<1x1x1xf32>
    %cst_26 = arith.constant 2.000000e+00 : f32
    %52 = arith.divf %51, %cst_26 : f32
    %53 = vector.broadcast %52 : f32 to vector<1x1xf32>
    %54 = vector.shape_cast %34 : vector<2x1xf32> to vector<2x1xf32>
    %55 = vector.broadcast %54 : vector<2x1xf32> to vector<2x128xf32>
    %56 = vector.shape_cast %53 : vector<1x1xf32> to vector<1x1xf32>
    %57 = vector.broadcast %56 : vector<1x1xf32> to vector<1x128xf32>
    %cst_27 = arith.constant 0.000000e+00 : f32
    %58 = vector.broadcast %cst_27 : f32 to vector<5x128xf32>
    %59 = tpu.concatenate %55, %57, %58 in 0 : vector<2x128xf32>, vector<1x128xf32>, vector<5x128xf32> -> vector<8x128xf32>
    %c0_28 = arith.constant 0 : index
    %c0_29 = arith.constant 0 : index
    %60 = vector.load %arg3[%c0_28, %c0_29] : memref<8x128xf32, #tpu.memory_space<vmem>>, vector<8x128xf32>
    tpu.vector_store %arg3[%c0_28, %c0_29], %59 {strides = array<i32>} : memref<8x128xf32, #tpu.memory_space<vmem>>, vector<8x128xf32>,
    return
  }
}

</mosaic_0001>

<llo_original>
// kernel: mkbn_forward.1
$region0: #{mkbn_forward.1}
  #allocation0 [shape = 'u32[]', space=smem, size = 0x4, offset = 0x4, fixed_abs, tag = 'smem constant byte address 0x4 - core index']
  #allocation1 [shape = 'u32[72,128]{1,0:T(1,128)}', space=vmem, size = 0x9000, scoped, tag = 'internal scratch']
  %s0 = inlined_call_operand.vmem [shape: f32[40,128], index: 0, kind: input, shape index: {}]
  %s1 = inlined_call_operand.vmem [shape: f32[18,16], index: 1, kind: input, shape index: {}]
  %s2 = inlined_call_operand.hbm [shape: bf16[384,128], index: 2, kind: input, shape index: {}]
  %s3 = inlined_call_operand.vmem [shape: f32[8,128], index: 3, kind: output, shape index: {}]
  %s4 = sld [smem:[#allocation0]]
  $region26: #{mkbn_forward.1} parent=0
    _
  %s6 = ssub.s32 1, %s4
  %s7 = scalar_select 0, %s6, %s4
  $region1: #{mkbn_forward.1} parent=0
    #allocation2 [shape = 'u8[98304]{0}', space=vmem, size = 0x18000, scoped, tag = 'input window, operand 2, single buffered']
    #allocation3 [shape = 's32[1]{0}', space=sflag, size = 0x4, scoped, tag = 'scoped memory for mkbn_forward.1']
    %8 = vsyncpa [#allocation3], 0
    // Predicated region
    $region2: #{mkbn_forward.1} parent=1 // pred_check
      _
    $region3: #{mkbn_forward.1} parent=1 // pred_check_branch
      %10 = sbr.rel (0) target = $region5
    $region4: #{mkbn_forward.1} parent=1 // pred_region
      _
    $region5: #{mkbn_forward.1} parent=1 // pred_fallthru
      _
    // Predicated region
    $region6: #{mkbn_forward.1} parent=1 // pred_check
      _
    $region7: #{mkbn_forward.1} parent=1 // pred_check_branch
      %12 = sbr.rel (0) target = $region9
    $region8: #{mkbn_forward.1} parent=1 // pred_region
      _
    $region9: #{mkbn_forward.1} parent=1 // pred_fallthru
      _
    // Predicated region
    $region10: #{mkbn_forward.1} parent=1 // pred_check
      _
    $region11: #{mkbn_forward.1} parent=1 // pred_check_branch
      %14 = sbr.rel (0) target = $region13
    $region12: #{mkbn_forward.1} parent=1 // pred_region
      %16 = vsyncadd [#allocation3], 0
      %s17 = sshll.u32 %s2, 4
      %s18 = int_to_ptr.hbm [resolvable:$true] %s17
      %s19 = sshll.u32 [#allocation2], 4
      %s20 = int_to_ptr.vmem [resolvable:$true] %s19
      %25 = dma.hbm_to_vmem [thread:$0]  %s18, 3072, %s20, [#allocation3], 64, 64, 4
    $region13: #{mkbn_forward.1} parent=1 // pred_fallthru
      _
    // Predicated region
    $region14: #{mkbn_forward.1} parent=1 // pred_check
      _
    $region15: #{mkbn_forward.1} parent=1 // pred_check_branch
      %27 = sbr.rel (0) target = $region17
    $region16: #{mkbn_forward.1} parent=1 // pred_region
      %29 = dma.done [#allocation3], 3072
    $region17: #{mkbn_forward.1} parent=1 // pred_fallthru
      _
    %v30 = vld [vmem:[%s1] sm:$0xff]
    %v31 = vld [vmem:[%s1 + $0x8] sm:$0xff]
    %v32 = vld [vmem:[%s1 + $0x10] sm:$0x3]
    %v33 = vld [vmem:[%s0] sm:$0xff]
    %v34 = vld [vmem:[%s0 + $0x8] sm:$0xff]
    %v35 = vld [vmem:[%s0 + $0x20] sm:$0x1]
    %v36 = vld [vmem:[%s0 + $0x21] sm:$0x1]
    %v37 = vld [vmem:[%s0 + $0x22] sm:$0x1]
    %v38 = vld [vmem:[%s0 + $0x23] sm:$0x1]
    %vm39 = vcmask 130048
    %v41 = vsel %vm39, %v30, 0
    %v44 = vsel %vm39, %v31, 0
    %46 = vmatpush.msra.mxu0 0.0
    %47 = vmatpush.msra.mxu0 0.0
    %48 = vmatpush.msra.mxu0 0.0
    %49 = vmatpush.msra.mxu0 0.0
    %50 = vmatpush.msra.mxu0 0.0
    %51 = vmatpush.msra.mxu0 0.0
    %52 = vmatpush.msra.mxu0 0.0
    %53 = vmatpush.msra.mxu0 0.0
    %54 = vmatpush.msra.mxu0 0.0
    %55 = vmatpush.msra.mxu0 0.0
    %56 = vmatpush.msra.mxu0 0.0
    %57 = vmatpush.msra.mxu0 0.0
    %58 = vmatpush.msra.mxu0 0.0
    %59 = vmatpush.msra.mxu0 0.0
    %60 = vmatpush.msra.mxu0 %v34
    %61 = vmatpush.msra.mxu0 %v33
    %62 = vmatmul.f32.gmra.mxu0 %v41
    %v63 = vpop.f32.mrf.mxu0
    %v64 = vadd.f32 0.0, %v63
    %65 = vmatmul.f32.gmra.mxu0 %v44
    %v66 = vpop.f32.mrf.mxu0
    %v67 = vadd.f32 0.0, %v66
    %68 = vdwg.mxu0
    %v69 = vpack.c.bf16 %v67, %v64
    %v70 = vld [vmem:[#allocation2] sm:$0xf]
    %v71 = vld [vmem:[#allocation2 + $0x4] sm:$0xf]
    %v72 = vld [vmem:[#allocation2 + $0x8] sm:$0xf]
    %v73 = vld [vmem:[#allocation2 + $0xc] sm:$0xf]
    %v74 = vld [vmem:[#allocation2 + $0x10] sm:$0xf]
    %v75 = vld [vmem:[#allocation2 + $0x14] sm:$0xf]
    %v76 = vld [vmem:[#allocation2 + $0x18] sm:$0xf]
    %v77 = vld [vmem:[#allocation2 + $0x1c] sm:$0xf]
    %v78 = vld [vmem:[#allocation2 + $0x20] sm:$0xf]
    %v79 = vld [vmem:[#allocation2 + $0x24] sm:$0xf]
    %v80 = vld [vmem:[#allocation2 + $0x28] sm:$0xf]
    %v81 = vld [vmem:[#allocation2 + $0x2c] sm:$0xf]
    %v82 = vld [vmem:[#allocation2 + $0x30] sm:$0xf]
    %v83 = vld [vmem:[#allocation2 + $0x34] sm:$0xf]
    %v84 = vld [vmem:[#allocation2 + $0x38] sm:$0xf]
    %v85 = vld [vmem:[#allocation2 + $0x3c] sm:$0xf]
    %v86 = vperm.slane %v35, 0
    %v103 = vunpack.c.l.b16 %v70
    %v104 = vunpack.c.l.b16 %v71
    %v105 = vunpack.c.l.b16 %v72
    %v106 = vunpack.c.l.b16 %v73
    %v107 = vunpack.c.l.b16 %v74
    %v108 = vunpack.c.l.b16 %v75
    %v109 = vunpack.c.l.b16 %v76
    %v110 = vunpack.c.l.b16 %v77
    %v111 = vunpack.c.l.b16 %v78
    %v112 = vunpack.c.l.b16 %v79
    %v113 = vunpack.c.l.b16 %v80
    %v114 = vunpack.c.l.b16 %v81
    %v115 = vunpack.c.l.b16 %v82
    %v116 = vunpack.c.l.b16 %v83
    %v117 = vunpack.c.l.b16 %v84
    %v118 = vunpack.c.l.b16 %v85
    %v119 = vpack.c.b16 %v104, %v103
    %v120 = vpack.c.b16 %v106, %v105
    %v121 = vpack.c.b16 %v108, %v107
    %v122 = vpack.c.b16 %v110, %v109
    %v123 = vpack.c.b16 %v112, %v111
    %v124 = vpack.c.b16 %v114, %v113
    %v125 = vpack.c.b16 %v116, %v115
    %v126 = vpack.c.b16 %v118, %v117
    %135 = vmatpush.bf16.msra.mxu0 %v126
    %136 = vmatpush.bf16.msra.mxu0 %v125
    %137 = vmatpush.bf16.msra.mxu0 %v124
    %138 = vmatpush.bf16.msra.mxu0 %v123
    %139 = vmatpush.bf16.msra.mxu0 %v122
    %140 = vmatpush.bf16.msra.mxu0 %v121
    %141 = vmatpush.bf16.msra.mxu0 %v120
    %142 = vmatpush.bf16.msra.mxu0 %v119
    %143 = vmatmul.bf16.gmra.mxu0 %v69
    %v144 = vpop.f32.mrf.mxu0
    %v145 = vadd.f32 %v86, %v144
    %v146 = vpop.f32.mrf.mxu0
    %v147 = vadd.f32 %v86, %v146
    %148 = vdwg.mxu0
    %v149 = vmax.f32 %v145, 0.0
    %v150 = vmax.f32 %v147, 0.0
    %v152 = vsel %vm39, %v32, 0
    %154 = vmatpush.msra.mxu0 0.0
    %155 = vmatpush.msra.mxu0 0.0
    %156 = vmatpush.msra.mxu0 0.0
    %157 = vmatpush.msra.mxu0 0.0
    %158 = vmatpush.msra.mxu0 0.0
    %159 = vmatpush.msra.mxu0 0.0
    %160 = vmatpush.msra.mxu0 0.0
    %161 = vmatpush.msra.mxu0 0.0
    %162 = vmatpush.msra.mxu0 0.0
    %163 = vmatpush.msra.mxu0 0.0
    %164 = vmatpush.msra.mxu0 0.0
    %165 = vmatpush.msra.mxu0 0.0
    %166 = vmatpush.msra.mxu0 0.0
    %167 = vmatpush.msra.mxu0 0.0
    %168 = vmatpush.msra.mxu0 %v150
    %169 = vmatpush.msra.mxu0 %v149
    %170 = vmatmul.f32.gmra.mxu0 %v152
    %v171 = vpop.f32.mrf.mxu0
    %v172 = vadd.f32 0.0, %v171
    %173 = vdwg.mxu0
    %v174 = vld [vmem:[%s0 + $0x10] sm:$0x3]
    %v175 = vpack.c.bf16 %v174, %v174
    %v176 = vld [vmem:[#allocation2 + $0x40] sm:$0xf]
    %v177 = vld [vmem:[#allocation2 + $0x44] sm:$0xf]
    %v178 = vld [vmem:[#allocation2 + $0x48] sm:$0xf]
    %v179 = vld [vmem:[#allocation2 + $0x4c] sm:$0xf]
    %v180 = vld [vmem:[#allocation2 + $0x50] sm:$0xf]
    %v181 = vld [vmem:[#allocation2 + $0x54] sm:$0xf]
    %v182 = vld [vmem:[#allocation2 + $0x58] sm:$0xf]
    %v183 = vld [vmem:[#allocation2 + $0x5c] sm:$0xf]
    %v184 = vld [vmem:[#allocation2 + $0x60] sm:$0xf]
    %v185 = vld [vmem:[#allocation2 + $0x64] sm:$0xf]
    %v186 = vld [vmem:[#allocation2 + $0x68] sm:$0xf]
    %v187 = vld [vmem:[#allocation2 + $0x6c] sm:$0xf]
    %v188 = vld [vmem:[#allocation2 + $0x70] sm:$0xf]
    %v189 = vld [vmem:[#allocation2 + $0x74] sm:$0xf]
    %v190 = vld [vmem:[#allocation2 + $0x78] sm:$0xf]
    %v191 = vld [vmem:[#allocation2 + $0x7c] sm:$0xf]
    %v192 = vpack.c.bf16 %v172, %v172
    %v193 = vld [vmem:[#allocation2 + $0x80] sm:$0xf]
    %v194 = vld [vmem:[#allocation2 + $0x84] sm:$0xf]
    %v195 = vld [vmem:[#allocation2 + $0x88] sm:$0xf]
    %v196 = vld [vmem:[#allocation2 + $0x8c] sm:$0xf]
    %v197 = vld [vmem:[#allocation2 + $0x90] sm:$0xf]
    %v198 = vld [vmem:[#allocation2 + $0x94] sm:$0xf]
    %v199 = vld [vmem:[#allocation2 + $0x98] sm:$0xf]
    %v200 = vld [vmem:[#allocation2 + $0x9c] sm:$0xf]
    %v201 = vld [vmem:[#allocation2 + $0xa0] sm:$0xf]
    %v202 = vld [vmem:[#allocation2 + $0xa4] sm:$0xf]
    %v203 = vld [vmem:[#allocation2 + $0xa8] sm:$0xf]
    %v204 = vld [vmem:[#allocation2 + $0xac] sm:$0xf]
    %v205 = vld [vmem:[#allocation2 + $0xb0] sm:$0xf]
    %v206 = vld [vmem:[#allocation2 + $0xb4] sm:$0xf]
    %v207 = vld [vmem:[#allocation2 + $0xb8] sm:$0xf]
    %v208 = vld [vmem:[#allocation2 + $0xbc] sm:$0xf]
    %v225 = vunpack.c.l.b16 %v193
    %v226 = vunpack.c.l.b16 %v194
    %v227 = vunpack.c.l.b16 %v195
    %v228 = vunpack.c.l.b16 %v196
    %v229 = vunpack.c.l.b16 %v197
    %v230 = vunpack.c.l.b16 %v198
    %v231 = vunpack.c.l.b16 %v199
    %v232 = vunpack.c.l.b16 %v200
    %v233 = vunpack.c.l.b16 %v201
    %v234 = vunpack.c.l.b16 %v202
    %v235 = vunpack.c.l.b16 %v203
    %v236 = vunpack.c.l.b16 %v204
    %v237 = vunpack.c.l.b16 %v205
    %v238 = vunpack.c.l.b16 %v206
    %v239 = vunpack.c.l.b16 %v207
    %v240 = vunpack.c.l.b16 %v208
    %v241 = vpack.c.b16 %v226, %v225
    %v242 = vpack.c.b16 %v228, %v227
    %v243 = vpack.c.b16 %v230, %v229
    %v244 = vpack.c.b16 %v232, %v231
    %v245 = vpack.c.b16 %v234, %v233
    %v246 = vpack.c.b16 %v236, %v235
    %v247 = vpack.c.b16 %v238, %v237
    %v248 = vpack.c.b16 %v240, %v239
    %257 = vmatpush.bf16.msra.mxu0 %v248
    %258 = vmatpush.bf16.msra.mxu0 %v247
    %259 = vmatpush.bf16.msra.mxu0 %v246
    %260 = vmatpush.bf16.msra.mxu0 %v245
    %261 = vmatpush.bf16.msra.mxu0 %v244
    %262 = vmatpush.bf16.msra.mxu0 %v243
    %263 = vmatpush.bf16.msra.mxu0 %v242
    %264 = vmatpush.bf16.msra.mxu0 %v241
    %265 = vmatmul.bf16.gmra.mxu0 %v192
    %v266 = vpop.f32.mrf.mxu0
    %v267 = vadd.f32 0.0, %v266
    %v268 = vpop.f32.mrf.mxu0
    %269 = vdwg.mxu0
    %v286 = vunpack.c.l.b16 %v176
    %v287 = vunpack.c.l.b16 %v177
    %v288 = vunpack.c.l.b16 %v178
    %v289 = vunpack.c.l.b16 %v179
    %v290 = vunpack.c.l.b16 %v180
    %v291 = vunpack.c.l.b16 %v181
    %v292 = vunpack.c.l.b16 %v182
    %v293 = vunpack.c.l.b16 %v183
    %v294 = vunpack.c.l.b16 %v184
    %v295 = vunpack.c.l.b16 %v185
    %v296 = vunpack.c.l.b16 %v186
    %v297 = vunpack.c.l.b16 %v187
    %v298 = vunpack.c.l.b16 %v188
    %v299 = vunpack.c.l.b16 %v189
    %v300 = vunpack.c.l.b16 %v190
    %v301 = vunpack.c.l.b16 %v191
    %v302 = vpack.c.b16 %v287, %v286
    %v303 = vpack.c.b16 %v289, %v288
    %v304 = vpack.c.b16 %v291, %v290
    %v305 = vpack.c.b16 %v293, %v292
    %v306 = vpack.c.b16 %v295, %v294
    %v307 = vpack.c.b16 %v297, %v296
    %v308 = vpack.c.b16 %v299, %v298
    %v309 = vpack.c.b16 %v301, %v300
    %318 = vmatpush.bf16.msra.mxu0 %v309
    %319 = vmatpush.bf16.msra.mxu0 %v308
    %320 = vmatpush.bf16.msra.mxu0 %v307
    %321 = vmatpush.bf16.msra.mxu0 %v306
    %322 = vmatpush.bf16.msra.mxu0 %v305
    %323 = vmatpush.bf16.msra.mxu0 %v304
    %324 = vmatpush.bf16.msra.mxu0 %v303
    %325 = vmatpush.bf16.msra.mxu0 %v302
    %326 = vmatmul.bf16.gmra.mxu0 %v175
    %v327 = vpop.f32.mrf.mxu0
    %v328 = vadd.f32 %v267, %v327
    %v329 = vpop.f32.mrf.mxu0
    %330 = vdwg.mxu0
    %v331 = vperm.slane %v36, 0
    %v332 = vadd.f32 %v328, %v331
    %v333 = vmax.f32 %v332, 0.0
    %v334 = vperm.slane %v37, 0
    %v335 = vmul.f32 %v333, %v334
    %vm336 = vcmask 1041408
    %v337 = vsel %vm336, %v335, 0.0
    %338 = vadd.xlane.f32.xlu0 %v337
    %v339 = vpop.xlane.xlu0 %338
    %v340 = vperm.slane %v38, 0
    %v341 = vadd.f32 %v339, %v340
    %v342 = vld [vmem:[%s0 + $0x18] sm:$0x3]
    %v343 = vmax.f32 %v341, 0.0
    %v344 = vmul.f32 %v341, %v342
    %v345 = vsub.f32 %v343, %v344
    %v346 = vand.u32 2147483647, %v341
    %v347 = vsub.f32 0.0, %v346
    %v348 = vmul.f32 %v347, 1.442695
    %v349 = vpow.pop %v348
    %v350 = vadd.f32 %v349, 1.0
    %v351 = vlog2.pop %v350
    %v352 = vmul.f32 %v351, 0.6931472
    %v353 = vadd.f32 %v345, %v352
    %vm354 = vcmask 1024
    %v355 = vsel %vm354, %v353, 0.0
    %356 = vadd.xlane.f32.xlu0 %v355
    %v357 = vpop.xlane.xlu0 %356
    %v358 = vrot.slane %v357, 4
    %v359 = vadd.f32 %v357, %v358
    %v360 = vrot.slane %v359, 2
    %v361 = vadd.f32 %v359, %v360
    %v362 = vrot.slane %v361, 1
    %v363 = vadd.f32 %v361, %v362
    %s364 = vtos %v363
    %v365 = vrcp.pop 2.0
    %v366 = vmul.f32 2.0, %v365
    %v367 = vsub.f32 1.0, %v366
    %v368 = vmul.f32 %v365, %v367
    %v369 = vadd.f32 %v365, %v368
    %vm370 = vweird.f32 %v365
    %v371 = vsel %vm370, %v365, %v369
    %s372 = vtos %v371
    %s373 = smul.f32 %s364, %s372
    %375 = vset.pattern.permute.xlu0 0
    %376 = vperm.xlu0 %375, %v341
    %v377 = vpop.permute.xlu0 %376
    %v379 = vstv %s373
    %v380 = vsel %vm336, %v377, %v379
    %vm381 = vcmask 1042432
    %v382 = vsel %vm381, %v380, 0.0
    %383 = vst [vmem:[%s3] sm:$0xff] %v382
    // Predicated region
    $region18: #{mkbn_forward.1} parent=1 // pred_check
      _
    $region19: #{mkbn_forward.1} parent=1 // pred_check_branch
      %385 = sbr.rel (0) target = $region21
    $region20: #{mkbn_forward.1} parent=1 // pred_region
      _
    $region21: #{mkbn_forward.1} parent=1 // pred_fallthru
      _
    // Predicated region
    $region22: #{mkbn_forward.1} parent=1 // pred_check
      _
    $region23: #{mkbn_forward.1} parent=1 // pred_check_branch
      %387 = sbr.rel (0) target = $region25
    $region24: #{mkbn_forward.1} parent=1 // pred_region
      _
    $region25: #{mkbn_forward.1} parent=1 // pred_fallthru
      _
    %388 = vsyncpa [#allocation3], 1

</llo_original>
